<compile_context>
chip_gen: v5e
topology: v5e:2x2
jax: 0.10.0
libtpu: 0.0.40
codegen_flags: <defaults>
</compile_context>

<pallas_src>
import functools
import math

import numpy as np
import jax
import jax.numpy as jnp
from jax.experimental import pallas as pl
from jax.experimental.pallas import tpu as pltpu


def _bilinear_resize_matrix(n_in: int, n_out: int) -> np.ndarray:
    """1-D bilinear interpolation matrix, PyTorch align_corners=True semantics."""
    m = np.zeros((n_out, n_in), dtype=np.float32)
    if n_out == 1 or n_in == 1:
        m[:, 0] = 1.0
        return m
    scale = (n_in - 1) / (n_out - 1)
    for i in range(n_out):
        src = i * scale
        lo = min(int(np.floor(src)), n_in - 1)
        hi = min(lo + 1, n_in - 1)
        frac = src - lo
        m[i, lo] += 1.0 - frac
        m[i, hi] += frac
    return m


def prgcn_kernel(x_ref, adjt_ref, dw1_ref, b1_ref, w2t_ref, b2_ref,
                 wu3_ref, bu3_ref, o_ref, *, B, K):
    # x_ref   : (B*K, H*W)  raw heatmaps, one row per (batch, keypoint)
    # adjt_ref: (K, K)      A^T
    # dw1_ref : (H*W, F)    kron(D,D)^T @ W1^T   (downsample folded into L1)
    # b1_ref  : (K, F)      b1^T
    # w2t_ref : (F, F)      W2^T
    # b2_ref  : (K, F)      b2^T
    # wu3_ref : (F, H*W)    W3^T @ kron(U,U)^T   (upsample folded into L3)
    # bu3_ref : (K, H*W)    b3^T @ kron(U,U)^T
    # o_ref   : (B*K, H*W)
    f32 = jnp.float32
    adjt = adjt_ref[...]
    b1 = b1_ref[...]

    # Layer 1 with the 0.5x bilinear downsample folded into its weight:
    #   t = X @ (DDT @ W1^T)  -- the single 256-deep contraction, M = B*K rows.
    t = jnp.dot(x_ref[...], dw1_ref[...], preferred_element_type=f32)       # (B*K, F)

    def propagate(h):
        # Block-diagonal kron(I_B, A^T) @ h WITHOUT materializing it: B
        # independent per-batch (K,K)@(K,·) matmuls whose fill/drain overlap.
        return [jnp.dot(adjt, h[b * K:(b + 1) * K, :], preferred_element_type=f32)
                for b in range(B)]

    # L1: graph propagation + bias (per-keypoint, added per batch block) + ReLU.
    h1 = jnp.concatenate([jnp.maximum(s + b1, 0.0) for s in propagate(t)], axis=0)

    # L2: propagation per batch, then one shared weight matmul over all B*K rows.
    s2 = jnp.concatenate(propagate(h1), axis=0)
    b2 = jnp.concatenate([b2_ref[...]] * B, axis=0)
    h2 = jnp.maximum(jnp.dot(s2, w2t_ref[...], preferred_element_type=f32) + b2, 0.0)

    # L3 with the 2x bilinear upsample folded into weight & bias: the final
    # matmul writes directly in the lane-dense (B*K, H*W) output layout.
    s3 = jnp.concatenate(propagate(h2), axis=0)
    bu3 = jnp.concatenate([bu3_ref[...]] * B, axis=0)
    up = jnp.dot(s3, wu3_ref[...], preferred_element_type=f32) + bu3
    o_ref[...] = jax.nn.sigmoid(up).astype(o_ref.dtype)


def prepare_prgcn_params(adj, w1, b1, w2, b2, w3, b3, height, width):
    """One-time host-side folding (model init). Weights are static at inference,
    so none of this runs per forward call."""
    H, W = height, width
    Hh, Wh = H // 2, W // 2

    d = _bilinear_resize_matrix(H, Hh).astype(np.float64)       # (H/2, H)
    u = _bilinear_resize_matrix(Hh, H).astype(np.float64)       # (H, H/2)
    ddt = np.kron(d, d).T                                       # (H*W, F)
    uut = np.kron(u, u).T                                       # (F, H*W)

    w1_, w2_, w3_ = (np.asarray(a, np.float64) for a in (w1, w2, w3))
    b1_, b2_, b3_ = (np.asarray(a, np.float64) for a in (b1, b2, b3))

    dw1 = ddt @ w1_.T            # (H*W, F)   downsample folded into L1 weight
    wu3 = w3_.T @ uut            # (F, H*W)   upsample folded into L3 weight
    bu3 = b3_.T @ uut            # (K, H*W)   upsample folded into L3 bias

    f32 = lambda a: jnp.asarray(np.asarray(a, np.float32))
    return (f32(np.asarray(adj).T), f32(dw1), f32(b1_.T), f32(w2_.T),
            f32(b2_.T), f32(wu3), f32(bu3))


@jax.jit
def prgcn_forward(x, adjt, dw1, b1t, w2t, b2t, wu3, bu3t):
    """Pallas implementation of PRGCN.forward on pre-folded parameters.

    x: (B, K, H, W) float32.  Returns (B, 1, K, H, W) float32.
    """
    B, K, H, W = x.shape
    HW = H * W
    F = dw1.shape[1]
    xr = x.reshape(B * K, HW)                                   # lane-dense rows

    kernel = functools.partial(prgcn_kernel, B=B, K=K)
    vmem = pl.BlockSpec(memory_space=pltpu.MemorySpace.VMEM)

    flops = 2 * (B * K * HW * F          # x @ DW1
                 + 3 * B * K * K * F     # three block-diagonal propagations
                 + B * K * F * F         # W2^T matmul
                 + B * K * F * HW)       # WU3 matmul
    bytes_accessed = 4 * (xr.size + adjt.size + dw1.size + b1t.size + w2t.size
                          + b2t.size + wu3.size + bu3t.size + B * K * HW)

    heat = pl.pallas_call(
        kernel,
        out_shape=jax.ShapeDtypeStruct((B * K, HW), x.dtype),
        in_specs=[vmem] * 8,
        out_specs=vmem,
        cost_estimate=pl.CostEstimate(flops=flops,
                                      transcendentals=B * K * HW,
                                      bytes_accessed=bytes_accessed),
    )(xr, adjt, dw1, b1t, w2t, b2t, wu3, bu3t)

    return heat.reshape(B, K, H, W)[:, None]                    # (B, 1, K, H, W)


def init_gcn_params(key, in_features, out_features, num_keypoints):
    """Deterministic re-implementation of GCN_layers.reset_parameters()."""
    stdv = 1.0 / math.sqrt(in_features)
    k_w, k_b = jax.random.split(key)
    weight = jax.random.uniform(
        k_w, (out_features, in_features), jnp.float32, minval=-stdv, maxval=stdv)
    bias = jax.random.uniform(
        k_b, (out_features, num_keypoints), jnp.float32, minval=-stdv, maxval=stdv)
    return weight, bias


def prgcn_reference(x, adj, w1, b1, w2, b2, w3, b3):
    """Pure-JAX layer-by-layer mirror of the PyTorch PRGCN.forward."""
    B, K, H, W = x.shape
    Hh, Wh = H // 2, W // 2
    d = jnp.asarray(_bilinear_resize_matrix(H, Hh))
    u = jnp.asarray(_bilinear_resize_matrix(Hh, H))

    xd = jnp.einsum("oh,bkhw,pw->bkop", d, x, d)            # F.interpolate(0.5, bilinear, ac=True)
    node = xd.reshape(B, K, Hh * Wh).transpose(0, 2, 1)     # (B, F, K)

    def gcn(inp, w, b):
        support = jnp.einsum("bfk,kj->bfj", inp, adj)
        return jnp.einsum("of,bfk->bok", w, support) + b[None]

    h = jax.nn.relu(gcn(node, w1, b1))
    h = jax.nn.relu(gcn(h, w2, b2))
    kp = gcn(h, w3, b3)                                     # (B, F, K)

    hm = kp.transpose(0, 2, 1).reshape(B, K, Hh, Wh)
    up = jnp.einsum("oh,bkhw,pw->bkop", u, hm, u)           # F.interpolate(2.0, bilinear, ac=True)
    return jax.nn.sigmoid(up)[:, None]                      # (B, 1, K, H, W)


if __name__ == "__main__":
    # Shapes consistent with the module: heatmap_size=16 -> featureSize=64,
    # num_keypoints=16, batch=2.
    B, K, H = 2, 16, 16
    Fdim = (H // 2) * (H // 2)

    key = jax.random.PRNGKey(0)
    k_x, k_adj, k1, k2, k3 = jax.random.split(key, 5)

    x = jax.random.normal(k_x, (B, K, H, H), jnp.float32)
    adj = jax.random.uniform(k_adj, (K, K), jnp.float32)
    adj = adj / jnp.sum(adj, axis=0, keepdims=True)         # normalized adjacency A

    w1, b1 = init_gcn_params(k1, Fdim, Fdim, K)
    w2, b2 = init_gcn_params(k2, Fdim, Fdim, K)
    w3, b3 = init_gcn_params(k3, Fdim, Fdim, K)

    # One-time host-side weight folding (model init), hoisted out of the
    # per-call forward path.
    params = prepare_prgcn_params(adj, w1, b1, w2, b2, w3, b3, H, H)

    out = jax.block_until_ready(prgcn_forward(x, *params))

    ref = prgcn_reference(x, adj, w1, b1, w2, b2, w3, b3)
    assert out.shape == (B, 1, K, H, H)
    # The kernel re-associates matmuls (resizes folded into L1/L3 weights);
    # under TPU DEFAULT (bf16-pass) matmul precision the two orderings can
    # differ by up to ~1e-3 at the sigmoid output, hence the tolerance.
    err = float(jnp.max(jnp.abs(out - ref)))
    assert err < 2e-3, err

    print("KERNEL_OK")
</pallas_src>

<mosaic_0001>
module attributes {stable_mosaic.version = 11 : i64} {
  func.func @prgcn_kernel(%arg0: memref<32x256xf32, #tpu.memory_space<vmem>>, %arg1: memref<16x16xf32, #tpu.memory_space<vmem>>, %arg2: memref<256x64xf32, #tpu.memory_space<vmem>>, %arg3: memref<16x64xf32, #tpu.memory_space<vmem>>, %arg4: memref<64x64xf32, #tpu.memory_space<vmem>>, %arg5: memref<16x64xf32, #tpu.memory_space<vmem>>, %arg6: memref<64x256xf32, #tpu.memory_space<vmem>>, %arg7: memref<16x256xf32, #tpu.memory_space<vmem>>, %arg8: memref<32x256xf32, #tpu.memory_space<vmem>>) attributes {dimension_semantics = [], scalar_prefetch = 0 : i64, scratch_operands = 0 : i64, tpu.core_type = #tpu.core_type<tc>} {
    %c0 = arith.constant 0 : index
    %c0_0 = arith.constant 0 : index
    %0 = vector.load %arg1[%c0, %c0_0] : memref<16x16xf32, #tpu.memory_space<vmem>>, vector<16x16xf32>
    %c0_1 = arith.constant 0 : index
    %c0_2 = arith.constant 0 : index
    %1 = vector.load %arg3[%c0_1, %c0_2] : memref<16x64xf32, #tpu.memory_space<vmem>>, vector<16x64xf32>
    %c0_3 = arith.constant 0 : index
    %c0_4 = arith.constant 0 : index
    %2 = vector.load %arg0[%c0_3, %c0_4] : memref<32x256xf32, #tpu.memory_space<vmem>>, vector<32x256xf32>
    %c0_5 = arith.constant 0 : index
    %c0_6 = arith.constant 0 : index
    %3 = vector.load %arg2[%c0_5, %c0_6] : memref<256x64xf32, #tpu.memory_space<vmem>>, vector<256x64xf32>
    %cst = arith.constant dense<0.000000e+00> : vector<32x64xf32>
    %4 = tpu.matmul %2, %3, %cst {dimension_numbers = #tpu.dot_dimension_numbers<[1], [0], [0], [1], [0, 0, 1, 1], [], []>} : vector<32x256xf32>, vector<256x64xf32>, vector<32x64xf32> -> vector<32x64xf32>
    %5 = vector.extract_strided_slice %4 {offsets = [0, 0], sizes = [16, 64], strides = [1, 1]} : vector<32x64xf32> to vector<16x64xf32>
    %cst_7 = arith.constant dense<0.000000e+00> : vector<16x64xf32>
    %6 = tpu.matmul %0, %5, %cst_7 {dimension_numbers = #tpu.dot_dimension_numbers<[1], [0], [0], [1], [0, 0, 1, 1], [], []>} : vector<16x16xf32>, vector<16x64xf32>, vector<16x64xf32> -> vector<16x64xf32>
    %7 = vector.extract_strided_slice %4 {offsets = [16, 0], sizes = [16, 64], strides = [1, 1]} : vector<32x64xf32> to vector<16x64xf32>
    %cst_8 = arith.constant dense<0.000000e+00> : vector<16x64xf32>
    %8 = tpu.matmul %0, %7, %cst_8 {dimension_numbers = #tpu.dot_dimension_numbers<[1], [0], [0], [1], [0, 0, 1, 1], [], []>} : vector<16x16xf32>, vector<16x64xf32>, vector<16x64xf32> -> vector<16x64xf32>
    %9 = arith.addf %6, %1 : vector<16x64xf32>
    %cst_9 = arith.constant 0.000000e+00 : f32
    %10 = vector.broadcast %cst_9 : f32 to vector<16x64xf32>
    %11 = arith.maximumf %9, %10 : vector<16x64xf32>
    %12 = arith.addf %8, %1 : vector<16x64xf32>
    %cst_10 = arith.constant 0.000000e+00 : f32
    %13 = vector.broadcast %cst_10 : f32 to vector<16x64xf32>
    %14 = arith.maximumf %12, %13 : vector<16x64xf32>
    %15 = tpu.concatenate %11, %14 in 0 : vector<16x64xf32>, vector<16x64xf32> -> vector<32x64xf32>
    %16 = vector.extract_strided_slice %15 {offsets = [0, 0], sizes = [16, 64], strides = [1, 1]} : vector<32x64xf32> to vector<16x64xf32>
    %cst_11 = arith.constant dense<0.000000e+00> : vector<16x64xf32>
    %17 = tpu.matmul %0, %16, %cst_11 {dimension_numbers = #tpu.dot_dimension_numbers<[1], [0], [0], [1], [0, 0, 1, 1], [], []>} : vector<16x16xf32>, vector<16x64xf32>, vector<16x64xf32> -> vector<16x64xf32>
    %18 = vector.extract_strided_slice %15 {offsets = [16, 0], sizes = [16, 64], strides = [1, 1]} : vector<32x64xf32> to vector<16x64xf32>
    %cst_12 = arith.constant dense<0.000000e+00> : vector<16x64xf32>
    %19 = tpu.matmul %0, %18, %cst_12 {dimension_numbers = #tpu.dot_dimension_numbers<[1], [0], [0], [1], [0, 0, 1, 1], [], []>} : vector<16x16xf32>, vector<16x64xf32>, vector<16x64xf32> -> vector<16x64xf32>
    %20 = tpu.concatenate %17, %19 in 0 : vector<16x64xf32>, vector<16x64xf32> -> vector<32x64xf32>
    %c0_13 = arith.constant 0 : index
    %c0_14 = arith.constant 0 : index
    %21 = vector.load %arg5[%c0_13, %c0_14] : memref<16x64xf32, #tpu.memory_space<vmem>>, vector<16x64xf32>
    %22 = tpu.concatenate %21, %21 in 0 : vector<16x64xf32>, vector<16x64xf32> -> vector<32x64xf32>
    %c0_15 = arith.constant 0 : index
    %c0_16 = arith.constant 0 : index
    %23 = vector.load %arg4[%c0_15, %c0_16] : memref<64x64xf32, #tpu.memory_space<vmem>>, vector<64x64xf32>
    %cst_17 = arith.constant dense<0.000000e+00> : vector<32x64xf32>
    %24 = tpu.matmul %20, %23, %cst_17 {dimension_numbers = #tpu.dot_dimension_numbers<[1], [0], [0], [1], [0, 0, 1, 1], [], []>} : vector<32x64xf32>, vector<64x64xf32>, vector<32x64xf32> -> vector<32x64xf32>
    %25 = arith.addf %24, %22 : vector<32x64xf32>
    %cst_18 = arith.constant 0.000000e+00 : f32
    %26 = vector.broadcast %cst_18 : f32 to vector<32x64xf32>
    %27 = arith.maximumf %25, %26 : vector<32x64xf32>
    %28 = vector.extract_strided_slice %27 {offsets = [0, 0], sizes = [16, 64], strides = [1, 1]} : vector<32x64xf32> to vector<16x64xf32>
    %cst_19 = arith.constant dense<0.000000e+00> : vector<16x64xf32>
    %29 = tpu.matmul %0, %28, %cst_19 {dimension_numbers = #tpu.dot_dimension_numbers<[1], [0], [0], [1], [0, 0, 1, 1], [], []>} : vector<16x16xf32>, vector<16x64xf32>, vector<16x64xf32> -> vector<16x64xf32>
    %30 = vector.extract_strided_slice %27 {offsets = [16, 0], sizes = [16, 64], strides = [1, 1]} : vector<32x64xf32> to vector<16x64xf32>
    %cst_20 = arith.constant dense<0.000000e+00> : vector<16x64xf32>
    %31 = tpu.matmul %0, %30, %cst_20 {dimension_numbers = #tpu.dot_dimension_numbers<[1], [0], [0], [1], [0, 0, 1, 1], [], []>} : vector<16x16xf32>, vector<16x64xf32>, vector<16x64xf32> -> vector<16x64xf32>
    %32 = tpu.concatenate %29, %31 in 0 : vector<16x64xf32>, vector<16x64xf32> -> vector<32x64xf32>
    %c0_21 = arith.constant 0 : index
    %c0_22 = arith.constant 0 : index
    %33 = vector.load %arg7[%c0_21, %c0_22] : memref<16x256xf32, #tpu.memory_space<vmem>>, vector<16x256xf32>
    %34 = tpu.concatenate %33, %33 in 0 : vector<16x256xf32>, vector<16x256xf32> -> vector<32x256xf32>
    %c0_23 = arith.constant 0 : index
    %c0_24 = arith.constant 0 : index
    %35 = vector.load %arg6[%c0_23, %c0_24] : memref<64x256xf32, #tpu.memory_space<vmem>>, vector<64x256xf32>
    %cst_25 = arith.constant dense<0.000000e+00> : vector<32x256xf32>
    %36 = tpu.matmul %32, %35, %cst_25 {dimension_numbers = #tpu.dot_dimension_numbers<[1], [0], [0], [1], [0, 0, 1, 1], [], []>} : vector<32x64xf32>, vector<64x256xf32>, vector<32x256xf32> -> vector<32x256xf32>
    %37 = arith.addf %36, %34 : vector<32x256xf32>
    %38 = arith.negf %37 : vector<32x256xf32>
    %39 = math.exp %38 : vector<32x256xf32>
    %cst_26 = arith.constant 1.000000e+00 : f32
    %40 = vector.broadcast %cst_26 : f32 to vector<32x256xf32>
    %41 = arith.addf %40, %39 : vector<32x256xf32>
    %42 = arith.divf %40, %41 : vector<32x256xf32>
    %c0_27 = arith.constant 0 : index
    %c0_28 = arith.constant 0 : index
    %43 = vector.load %arg8[%c0_27, %c0_28] : memref<32x256xf32, #tpu.memory_space<vmem>>, vector<32x256xf32>
    tpu.vector_store %arg8[%c0_27, %c0_28], %42 {strides = array<i32>} : memref<32x256xf32, #tpu.memory_space<vmem>>, vector<32x256xf32>,
    return
  }
}

</mosaic_0001>

<llo_original>
// kernel: prgcn_forward.1
$region0: #{prgcn_forward.1}
  #allocation0 [shape = 'u32[]', space=smem, size = 0x4, offset = 0x4, fixed_abs, tag = 'smem constant byte address 0x4 - core index']
  #allocation1 [shape = 'u32[72,128]{1,0:T(1,128)}', space=vmem, size = 0x9000, scoped, tag = 'internal scratch']
  %s0 = inlined_call_operand.vmem [shape: f32[32,256], index: 0, kind: input, shape index: {}]
  %s1 = inlined_call_operand.vmem [shape: f32[16,16], index: 1, kind: input, shape index: {}]
  %s2 = inlined_call_operand.vmem [shape: f32[256,64], index: 2, kind: input, shape index: {}]
  %s3 = inlined_call_operand.vmem [shape: f32[16,64], index: 3, kind: input, shape index: {}]
  %s4 = inlined_call_operand.vmem [shape: f32[64,64], index: 4, kind: input, shape index: {}]
  %s5 = inlined_call_operand.vmem [shape: f32[16,64], index: 5, kind: input, shape index: {}]
  %s6 = inlined_call_operand.vmem [shape: f32[64,256], index: 6, kind: input, shape index: {}]
  %s7 = inlined_call_operand.vmem [shape: f32[16,256], index: 7, kind: input, shape index: {}]
  %s8 = inlined_call_operand.vmem [shape: f32[32,256], index: 8, kind: output, shape index: {}]
  %s9 = sld [smem:[#allocation0]]
  $region42: #{prgcn_forward.1} parent=0
    _
  %s11 = ssub.s32 1, %s9
  %s12 = scalar_select 0, %s11, %s9
  // Predicated region
  $region2: #{prgcn_forward.1} parent=0 // pred_check
    _
  $region3: #{prgcn_forward.1} parent=0 // pred_check_branch
    %14 = sbr.rel (0) target = $region5
  $region4: #{prgcn_forward.1} parent=0 // pred_region
    _
  $region5: #{prgcn_forward.1} parent=0 // pred_fallthru
    _
  // Predicated region
  $region6: #{prgcn_forward.1} parent=0 // pred_check
    _
  $region7: #{prgcn_forward.1} parent=0 // pred_check_branch
    %16 = sbr.rel (0) target = $region9
  $region8: #{prgcn_forward.1} parent=0 // pred_region
    _
  $region9: #{prgcn_forward.1} parent=0 // pred_fallthru
    _
  // Predicated region
  $region10: #{prgcn_forward.1} parent=0 // pred_check
    _
  $region11: #{prgcn_forward.1} parent=0 // pred_check_branch
    %18 = sbr.rel (0) target = $region13
  $region12: #{prgcn_forward.1} parent=0 // pred_region
    _
  $region13: #{prgcn_forward.1} parent=0 // pred_fallthru
    _
  // Predicated region
  $region14: #{prgcn_forward.1} parent=0 // pred_check
    _
  $region15: #{prgcn_forward.1} parent=0 // pred_check_branch
    %20 = sbr.rel (0) target = $region17
  $region16: #{prgcn_forward.1} parent=0 // pred_region
    _
  $region17: #{prgcn_forward.1} parent=0 // pred_fallthru
    _
  // Predicated region
  $region18: #{prgcn_forward.1} parent=0 // pred_check
    _
  $region19: #{prgcn_forward.1} parent=0 // pred_check_branch
    %22 = sbr.rel (0) target = $region21
  $region20: #{prgcn_forward.1} parent=0 // pred_region
    _
  $region21: #{prgcn_forward.1} parent=0 // pred_fallthru
    _
  // Predicated region
  $region22: #{prgcn_forward.1} parent=0 // pred_check
    _
  $region23: #{prgcn_forward.1} parent=0 // pred_check_branch
    %24 = sbr.rel (0) target = $region25
  $region24: #{prgcn_forward.1} parent=0 // pred_region
    _
  $region25: #{prgcn_forward.1} parent=0 // pred_fallthru
    _
  // Predicated region
  $region26: #{prgcn_forward.1} parent=0 // pred_check
    _
  $region27: #{prgcn_forward.1} parent=0 // pred_check_branch
    %26 = sbr.rel (0) target = $region29
  $region28: #{prgcn_forward.1} parent=0 // pred_region
    _
  $region29: #{prgcn_forward.1} parent=0 // pred_fallthru
    _
  // Predicated region
  $region30: #{prgcn_forward.1} parent=0 // pred_check
    _
  $region31: #{prgcn_forward.1} parent=0 // pred_check_branch
    %28 = sbr.rel (0) target = $region33
  $region32: #{prgcn_forward.1} parent=0 // pred_region
    _
  $region33: #{prgcn_forward.1} parent=0 // pred_fallthru
    _
  %v29 = vld [vmem:[%s1] sm:$0xff]
  %v30 = vld [vmem:[%s1 + $0x8] sm:$0xff]
  %v31 = vld [vmem:[%s3] sm:$0xff]
  %v32 = vld [vmem:[%s3 + $0x8] sm:$0xff]
  %v33 = vld [vmem:[%s0] sm:$0xff]
  %v34 = vld [vmem:[%s0 + $0x8] sm:$0xff]
  %v35 = vld [vmem:[%s0 + $0x10] sm:$0xff]
  %v36 = vld [vmem:[%s0 + $0x18] sm:$0xff]
  %v37 = vld [vmem:[%s0 + $0x20] sm:$0xff]
  %v38 = vld [vmem:[%s0 + $0x28] sm:$0xff]
  %v39 = vld [vmem:[%s0 + $0x30] sm:$0xff]
  %v40 = vld [vmem:[%s0 + $0x38] sm:$0xff]
  %v41 = vld [vmem:[%s2] sm:$0xff]
  %v42 = vld [vmem:[%s2 + $0x8] sm:$0xff]
  %v43 = vld [vmem:[%s2 + $0x10] sm:$0xff]
  %v44 = vld [vmem:[%s2 + $0x18] sm:$0xff]
  %v45 = vld [vmem:[%s2 + $0x20] sm:$0xff]
  %v46 = vld [vmem:[%s2 + $0x28] sm:$0xff]
  %v47 = vld [vmem:[%s2 + $0x30] sm:$0xff]
  %v48 = vld [vmem:[%s2 + $0x38] sm:$0xff]
  %v49 = vld [vmem:[%s2 + $0x40] sm:$0xff]
  %v50 = vld [vmem:[%s2 + $0x48] sm:$0xff]
  %v51 = vld [vmem:[%s2 + $0x50] sm:$0xff]
  %v52 = vld [vmem:[%s2 + $0x58] sm:$0xff]
  %v53 = vld [vmem:[%s2 + $0x60] sm:$0xff]
  %v54 = vld [vmem:[%s2 + $0x68] sm:$0xff]
  %v55 = vld [vmem:[%s2 + $0x70] sm:$0xff]
  %v56 = vld [vmem:[%s2 + $0x78] sm:$0xff]
  %v57 = vld [vmem:[%s2 + $0x80] sm:$0xff]
  %v58 = vld [vmem:[%s2 + $0x88] sm:$0xff]
  %v59 = vld [vmem:[%s2 + $0x90] sm:$0xff]
  %v60 = vld [vmem:[%s2 + $0x98] sm:$0xff]
  %v61 = vld [vmem:[%s2 + $0xa0] sm:$0xff]
  %v62 = vld [vmem:[%s2 + $0xa8] sm:$0xff]
  %v63 = vld [vmem:[%s2 + $0xb0] sm:$0xff]
  %v64 = vld [vmem:[%s2 + $0xb8] sm:$0xff]
  %v65 = vld [vmem:[%s2 + $0xc0] sm:$0xff]
  %v66 = vld [vmem:[%s2 + $0xc8] sm:$0xff]
  %v67 = vld [vmem:[%s2 + $0xd0] sm:$0xff]
  %v68 = vld [vmem:[%s2 + $0xd8] sm:$0xff]
  %v69 = vld [vmem:[%s2 + $0xe0] sm:$0xff]
  %v70 = vld [vmem:[%s2 + $0xe8] sm:$0xff]
  %v71 = vld [vmem:[%s2 + $0xf0] sm:$0xff]
  %v72 = vld [vmem:[%s2 + $0xf8] sm:$0xff]
  %73 = vmatpush.msra.mxu0 %v56
  %74 = vmatpush.msra.mxu0 %v55
  %75 = vmatpush.msra.mxu0 %v54
  %76 = vmatpush.msra.mxu0 %v53
  %77 = vmatpush.msra.mxu0 %v52
  %78 = vmatpush.msra.mxu0 %v51
  %79 = vmatpush.msra.mxu0 %v50
  %80 = vmatpush.msra.mxu0 %v49
  %81 = vmatpush.msra.mxu0 %v48
  %82 = vmatpush.msra.mxu0 %v47
  %83 = vmatpush.msra.mxu0 %v46
  %84 = vmatpush.msra.mxu0 %v45
  %85 = vmatpush.msra.mxu0 %v44
  %86 = vmatpush.msra.mxu0 %v43
  %87 = vmatpush.msra.mxu0 %v42
  %88 = vmatpush.msra.mxu0 %v41
  %89 = vmatmul.f32.gmra.mxu0 %v33
  %v90 = vpop.f32.mrf.mxu0
  %v91 = vadd.f32 0.0, %v90
  %92 = vmatmul.f32.gmra.mxu0 %v35
  %v93 = vpop.f32.mrf.mxu0
  %v94 = vadd.f32 0.0, %v93
  %95 = vmatmul.f32.gmra.mxu0 %v37
  %v96 = vpop.f32.mrf.mxu0
  %v97 = vadd.f32 0.0, %v96
  %98 = vmatmul.f32.gmra.mxu0 %v39
  %v99 = vpop.f32.mrf.mxu0
  %v100 = vadd.f32 0.0, %v99
  %101 = vdwg.mxu0
  %102 = vmatpush.msra.mxu0 %v72
  %103 = vmatpush.msra.mxu0 %v71
  %104 = vmatpush.msra.mxu0 %v70
  %105 = vmatpush.msra.mxu0 %v69
  %106 = vmatpush.msra.mxu0 %v68
  %107 = vmatpush.msra.mxu0 %v67
  %108 = vmatpush.msra.mxu0 %v66
  %109 = vmatpush.msra.mxu0 %v65
  %110 = vmatpush.msra.mxu0 %v64
  %111 = vmatpush.msra.mxu0 %v63
  %112 = vmatpush.msra.mxu0 %v62
  %113 = vmatpush.msra.mxu0 %v61
  %114 = vmatpush.msra.mxu0 %v60
  %115 = vmatpush.msra.mxu0 %v59
  %116 = vmatpush.msra.mxu0 %v58
  %117 = vmatpush.msra.mxu0 %v57
  %118 = vmatmul.f32.gmra.mxu0 %v34
  %v119 = vpop.f32.mrf.mxu0
  %v120 = vadd.f32 %v91, %v119
  %121 = vmatmul.f32.gmra.mxu0 %v36
  %v122 = vpop.f32.mrf.mxu0
  %v123 = vadd.f32 %v94, %v122
  %124 = vmatmul.f32.gmra.mxu0 %v38
  %v125 = vpop.f32.mrf.mxu0
  %v126 = vadd.f32 %v97, %v125
  %127 = vmatmul.f32.gmra.mxu0 %v40
  %v128 = vpop.f32.mrf.mxu0
  %v129 = vadd.f32 %v100, %v128
  %130 = vdwg.mxu0
  %vm131 = vcmask 130048
  %v133 = vsel %vm131, %v29, 0
  %v136 = vsel %vm131, %v30, 0
  %138 = vmatpush.msra.mxu0 0.0
  %139 = vmatpush.msra.mxu0 0.0
  %140 = vmatpush.msra.mxu0 0.0
  %141 = vmatpush.msra.mxu0 0.0
  %142 = vmatpush.msra.mxu0 0.0
  %143 = vmatpush.msra.mxu0 0.0
  %144 = vmatpush.msra.mxu0 0.0
  %145 = vmatpush.msra.mxu0 0.0
  %146 = vmatpush.msra.mxu0 0.0
  %147 = vmatpush.msra.mxu0 0.0
  %148 = vmatpush.msra.mxu0 0.0
  %149 = vmatpush.msra.mxu0 0.0
  %150 = vmatpush.msra.mxu0 0.0
  %151 = vmatpush.msra.mxu0 0.0
  %152 = vmatpush.msra.mxu0 %v123
  %153 = vmatpush.msra.mxu0 %v120
  %154 = vmatmul.f32.gmra.mxu0 %v133
  %v155 = vpop.f32.mrf.mxu0
  %v156 = vadd.f32 %v31, %v155
  %157 = vmatmul.f32.gmra.mxu0 %v136
  %v158 = vpop.f32.mrf.mxu0
  %v159 = vadd.f32 %v32, %v158
  %160 = vdwg.mxu0
  %v161 = vmax.f32 %v156, 0.0
  %v162 = vmax.f32 %v159, 0.0
  %163 = vmatpush.msra.mxu0 0.0
  %164 = vmatpush.msra.mxu0 0.0
  %165 = vmatpush.msra.mxu0 0.0
  %166 = vmatpush.msra.mxu0 0.0
  %167 = vmatpush.msra.mxu0 0.0
  %168 = vmatpush.msra.mxu0 0.0
  %169 = vmatpush.msra.mxu0 0.0
  %170 = vmatpush.msra.mxu0 0.0
  %171 = vmatpush.msra.mxu0 0.0
  %172 = vmatpush.msra.mxu0 0.0
  %173 = vmatpush.msra.mxu0 0.0
  %174 = vmatpush.msra.mxu0 0.0
  %175 = vmatpush.msra.mxu0 0.0
  %176 = vmatpush.msra.mxu0 0.0
  %177 = vmatpush.msra.mxu0 %v129
  %178 = vmatpush.msra.mxu0 %v126
  %179 = vmatmul.f32.gmra.mxu0 %v133
  %v180 = vpop.f32.mrf.mxu0
  %v181 = vadd.f32 %v31, %v180
  %182 = vmatmul.f32.gmra.mxu0 %v136
  %v183 = vpop.f32.mrf.mxu0
  %v184 = vadd.f32 %v32, %v183
  %185 = vdwg.mxu0
  %v186 = vmax.f32 %v181, 0.0
  %v187 = vmax.f32 %v184, 0.0
  %188 = vmatpush.msra.mxu0 0.0
  %189 = vmatpush.msra.mxu0 0.0
  %190 = vmatpush.msra.mxu0 0.0
  %191 = vmatpush.msra.mxu0 0.0
  %192 = vmatpush.msra.mxu0 0.0
  %193 = vmatpush.msra.mxu0 0.0
  %194 = vmatpush.msra.mxu0 0.0
  %195 = vmatpush.msra.mxu0 0.0
  %196 = vmatpush.msra.mxu0 0.0
  %197 = vmatpush.msra.mxu0 0.0
  %198 = vmatpush.msra.mxu0 0.0
  %199 = vmatpush.msra.mxu0 0.0
  %200 = vmatpush.msra.mxu0 0.0
  %201 = vmatpush.msra.mxu0 0.0
  %202 = vmatpush.msra.mxu0 %v162
  %203 = vmatpush.msra.mxu0 %v161
  %204 = vmatmul.f32.gmra.mxu0 %v133
  %v205 = vpop.f32.mrf.mxu0
  %v206 = vadd.f32 0.0, %v205
  %207 = vmatmul.f32.gmra.mxu0 %v136
  %v208 = vpop.f32.mrf.mxu0
  %v209 = vadd.f32 0.0, %v208
  %210 = vdwg.mxu0
  %211 = vmatpush.msra.mxu0 0.0
  %212 = vmatpush.msra.mxu0 0.0
  %213 = vmatpush.msra.mxu0 0.0
  %214 = vmatpush.msra.mxu0 0.0
  %215 = vmatpush.msra.mxu0 0.0
  %216 = vmatpush.msra.mxu0 0.0
  %217 = vmatpush.msra.mxu0 0.0
  %218 = vmatpush.msra.mxu0 0.0
  %219 = vmatpush.msra.mxu0 0.0
  %220 = vmatpush.msra.mxu0 0.0
  %221 = vmatpush.msra.mxu0 0.0
  %222 = vmatpush.msra.mxu0 0.0
  %223 = vmatpush.msra.mxu0 0.0
  %224 = vmatpush.msra.mxu0 0.0
  %225 = vmatpush.msra.mxu0 %v187
  %226 = vmatpush.msra.mxu0 %v186
  %227 = vmatmul.f32.gmra.mxu0 %v133
  %v228 = vpop.f32.mrf.mxu0
  %v229 = vadd.f32 0.0, %v228
  %230 = vmatmul.f32.gmra.mxu0 %v136
  %v231 = vpop.f32.mrf.mxu0
  %v232 = vadd.f32 0.0, %v231
  %233 = vdwg.mxu0
  %v234 = vld [vmem:[%s5] sm:$0xff]
  %v235 = vld [vmem:[%s5 + $0x8] sm:$0xff]
  %v236 = vld [vmem:[%s4] sm:$0xff]
  %v237 = vld [vmem:[%s4 + $0x8] sm:$0xff]
  %v238 = vld [vmem:[%s4 + $0x10] sm:$0xff]
  %v239 = vld [vmem:[%s4 + $0x18] sm:$0xff]
  %v240 = vld [vmem:[%s4 + $0x20] sm:$0xff]
  %v241 = vld [vmem:[%s4 + $0x28] sm:$0xff]
  %v242 = vld [vmem:[%s4 + $0x30] sm:$0xff]
  %v243 = vld [vmem:[%s4 + $0x38] sm:$0xff]
  %vm244 = vcmask 523264
  %v246 = vsel %vm244, %v206, 0
  %v249 = vsel %vm244, %v209, 0
  %v252 = vsel %vm244, %v229, 0
  %v255 = vsel %vm244, %v232, 0
  %257 = vmatpush.msra.mxu0 0.0
  %258 = vmatpush.msra.mxu0 0.0
  %259 = vmatpush.msra.mxu0 0.0
  %260 = vmatpush.msra.mxu0 0.0
  %261 = vmatpush.msra.mxu0 0.0
  %262 = vmatpush.msra.mxu0 0.0
  %263 = vmatpush.msra.mxu0 0.0
  %264 = vmatpush.msra.mxu0 0.0
  %265 = vmatpush.msra.mxu0 %v243
  %266 = vmatpush.msra.mxu0 %v242
  %267 = vmatpush.msra.mxu0 %v241
  %268 = vmatpush.msra.mxu0 %v240
  %269 = vmatpush.msra.mxu0 %v239
  %270 = vmatpush.msra.mxu0 %v238
  %271 = vmatpush.msra.mxu0 %v237
  %272 = vmatpush.msra.mxu0 %v236
  %273 = vmatmul.f32.gmra.mxu0 %v246
  %v274 = vpop.f32.mrf.mxu0
  %v275 = vadd.f32 %v234, %v274
  %276 = vmatmul.f32.gmra.mxu0 %v249
  %v277 = vpop.f32.mrf.mxu0
  %v278 = vadd.f32 %v235, %v277
  %279 = vmatmul.f32.gmra.mxu0 %v252
  %v280 = vpop.f32.mrf.mxu0
  %v281 = vadd.f32 %v234, %v280
  %282 = vmatmul.f32.gmra.mxu0 %v255
  %v283 = vpop.f32.mrf.mxu0
  %v284 = vadd.f32 %v235, %v283
  %285 = vdwg.mxu0
  %v286 = vmax.f32 %v275, 0.0
  %v287 = vmax.f32 %v278, 0.0
  %v288 = vmax.f32 %v281, 0.0
  %v289 = vmax.f32 %v284, 0.0
  %290 = vmatpush.msra.mxu0 0.0
  %291 = vmatpush.msra.mxu0 0.0
  %292 = vmatpush.msra.mxu0 0.0
  %293 = vmatpush.msra.mxu0 0.0
  %294 = vmatpush.msra.mxu0 0.0
  %295 = vmatpush.msra.mxu0 0.0
  %296 = vmatpush.msra.mxu0 0.0
  %297 = vmatpush.msra.mxu0 0.0
  %298 = vmatpush.msra.mxu0 0.0
  %299 = vmatpush.msra.mxu0 0.0
  %300 = vmatpush.msra.mxu0 0.0
  %301 = vmatpush.msra.mxu0 0.0
  %302 = vmatpush.msra.mxu0 0.0
  %303 = vmatpush.msra.mxu0 0.0
  %304 = vmatpush.msra.mxu0 %v287
  %305 = vmatpush.msra.mxu0 %v286
  %306 = vmatmul.f32.gmra.mxu0 %v133
  %v307 = vpop.f32.mrf.mxu0
  %v308 = vadd.f32 0.0, %v307
  %309 = vmatmul.f32.gmra.mxu0 %v136
  %v310 = vpop.f32.mrf.mxu0
  %v311 = vadd.f32 0.0, %v310
  %312 = vdwg.mxu0
  %313 = vmatpush.msra.mxu0 0.0
  %314 = vmatpush.msra.mxu0 0.0
  %315 = vmatpush.msra.mxu0 0.0
  %316 = vmatpush.msra.mxu0 0.0
  %317 = vmatpush.msra.mxu0 0.0
  %318 = vmatpush.msra.mxu0 0.0
  %319 = vmatpush.msra.mxu0 0.0
  %320 = vmatpush.msra.mxu0 0.0
  %321 = vmatpush.msra.mxu0 0.0
  %322 = vmatpush.msra.mxu0 0.0
  %323 = vmatpush.msra.mxu0 0.0
  %324 = vmatpush.msra.mxu0 0.0
  %325 = vmatpush.msra.mxu0 0.0
  %326 = vmatpush.msra.mxu0 0.0
  %327 = vmatpush.msra.mxu0 %v289
  %328 = vmatpush.msra.mxu0 %v288
  %329 = vmatmul.f32.gmra.mxu0 %v133
  %v330 = vpop.f32.mrf.mxu0
  %v331 = vadd.f32 0.0, %v330
  %332 = vmatmul.f32.gmra.mxu0 %v136
  %v333 = vpop.f32.mrf.mxu0
  %v334 = vadd.f32 0.0, %v333
  %335 = vdwg.mxu0
  %v336 = vld [vmem:[%s7] sm:$0xff]
  %v337 = vld [vmem:[%s7 + $0x8] sm:$0xff]
  %v338 = vld [vmem:[%s7 + $0x10] sm:$0xff]
  %v339 = vld [vmem:[%s7 + $0x18] sm:$0xff]
  %v340 = vld [vmem:[%s6] sm:$0xff]
  %v341 = vld [vmem:[%s6 + $0x8] sm:$0xff]
  %v342 = vld [vmem:[%s6 + $0x10] sm:$0xff]
  %v343 = vld [vmem:[%s6 + $0x18] sm:$0xff]
  %v344 = vld [vmem:[%s6 + $0x20] sm:$0xff]
  %v345 = vld [vmem:[%s6 + $0x28] sm:$0xff]
  %v346 = vld [vmem:[%s6 + $0x30] sm:$0xff]
  %v347 = vld [vmem:[%s6 + $0x38] sm:$0xff]
  %v348 = vld [vmem:[%s6 + $0x40] sm:$0xff]
  %v349 = vld [vmem:[%s6 + $0x48] sm:$0xff]
  %v350 = vld [vmem:[%s6 + $0x50] sm:$0xff]
  %v351 = vld [vmem:[%s6 + $0x58] sm:$0xff]
  %v352 = vld [vmem:[%s6 + $0x60] sm:$0xff]
  %v353 = vld [vmem:[%s6 + $0x68] sm:$0xff]
  %v354 = vld [vmem:[%s6 + $0x70] sm:$0xff]
  %v355 = vld [vmem:[%s6 + $0x78] sm:$0xff]
  %v357 = vsel %vm244, %v308, 0
  %v360 = vsel %vm244, %v311, 0
  %v363 = vsel %vm244, %v331, 0
  %v366 = vsel %vm244, %v334, 0
  %368 = vmatpush.msra.mxu0 0.0
  %369 = vmatpush.msra.mxu0 0.0
  %370 = vmatpush.msra.mxu0 0.0
  %371 = vmatpush.msra.mxu0 0.0
  %372 = vmatpush.msra.mxu0 0.0
  %373 = vmatpush.msra.mxu0 0.0
  %374 = vmatpush.msra.mxu0 0.0
  %375 = vmatpush.msra.mxu0 0.0
  %376 = vmatpush.msra.mxu0 %v354
  %377 = vmatpush.msra.mxu0 %v352
  %378 = vmatpush.msra.mxu0 %v350
  %379 = vmatpush.msra.mxu0 %v348
  %380 = vmatpush.msra.mxu0 %v346
  %381 = vmatpush.msra.mxu0 %v344
  %382 = vmatpush.msra.mxu0 %v342
  %383 = vmatpush.msra.mxu0 %v340
  %384 = vmatmul.f32.gmra.mxu0 %v357
  %v385 = vpop.f32.mrf.mxu0
  %v386 = vadd.f32 %v336, %v385
  %387 = vmatmul.f32.gmra.mxu0 %v360
  %v388 = vpop.f32.mrf.mxu0
  %v389 = vadd.f32 %v338, %v388
  %390 = vmatmul.f32.gmra.mxu0 %v363
  %v391 = vpop.f32.mrf.mxu0
  %v392 = vadd.f32 %v336, %v391
  %393 = vmatmul.f32.gmra.mxu0 %v366
  %v394 = vpop.f32.mrf.mxu0
  %v395 = vadd.f32 %v338, %v394
  %396 = vdwg.mxu0
  %397 = vmatpush.msra.mxu0 0.0
  %398 = vmatpush.msra.mxu0 0.0
  %399 = vmatpush.msra.mxu0 0.0
  %400 = vmatpush.msra.mxu0 0.0
  %401 = vmatpush.msra.mxu0 0.0
  %402 = vmatpush.msra.mxu0 0.0
  %403 = vmatpush.msra.mxu0 0.0
  %404 = vmatpush.msra.mxu0 0.0
  %405 = vmatpush.msra.mxu0 %v355
  %406 = vmatpush.msra.mxu0 %v353
  %407 = vmatpush.msra.mxu0 %v351
  %408 = vmatpush.msra.mxu0 %v349
  %409 = vmatpush.msra.mxu0 %v347
  %410 = vmatpush.msra.mxu0 %v345
  %411 = vmatpush.msra.mxu0 %v343
  %412 = vmatpush.msra.mxu0 %v341
  %413 = vmatmul.f32.gmra.mxu0 %v357
  %v414 = vpop.f32.mrf.mxu0
  %v415 = vadd.f32 %v337, %v414
  %416 = vmatmul.f32.gmra.mxu0 %v360
  %v417 = vpop.f32.mrf.mxu0
  %v418 = vadd.f32 %v339, %v417
  %419 = vmatmul.f32.gmra.mxu0 %v363
  %v420 = vpop.f32.mrf.mxu0
  %v421 = vadd.f32 %v337, %v420
  %422 = vmatmul.f32.gmra.mxu0 %v366
  %v423 = vpop.f32.mrf.mxu0
  %v424 = vadd.f32 %v339, %v423
  %425 = vdwg.mxu0
  %v426 = vxor.u32 %v386, 2147483648
  %v427 = vxor.u32 %v415, 2147483648
  %v428 = vxor.u32 %v389, 2147483648
  %v429 = vxor.u32 %v418, 2147483648
  %v430 = vxor.u32 %v392, 2147483648
  %v431 = vxor.u32 %v421, 2147483648
  %v432 = vxor.u32 %v395, 2147483648
  %v433 = vxor.u32 %v424, 2147483648
  %v434 = vmul.f32 %v426, 1.442695
  %v435 = vpow.pop %v434
  %v436 = vmul.f32 %v427, 1.442695
  %v437 = vpow.pop %v436
  %v438 = vmul.f32 %v428, 1.442695
  %v439 = vpow.pop %v438
  %v440 = vmul.f32 %v429, 1.442695
  %v441 = vpow.pop %v440
  %v442 = vmul.f32 %v430, 1.442695
  %v443 = vpow.pop %v442
  %v444 = vmul.f32 %v431, 1.442695
  %v445 = vpow.pop %v444
  %v446 = vmul.f32 %v432, 1.442695
  %v447 = vpow.pop %v446
  %v448 = vmul.f32 %v433, 1.442695
  %v449 = vpow.pop %v448
  %v450 = vadd.f32 %v435, 1.0
  %v451 = vadd.f32 %v437, 1.0
  %v452 = vadd.f32 %v439, 1.0
  %v453 = vadd.f32 %v441, 1.0
  %v454 = vadd.f32 %v443, 1.0
  %v455 = vadd.f32 %v445, 1.0
  %v456 = vadd.f32 %v447, 1.0
  %v457 = vadd.f32 %v449, 1.0
  %v458 = vrcp.pop %v450
  %v459 = vmul.f32 %v450, %v458
  %v460 = vsub.f32 1.0, %v459
  %v461 = vmul.f32 %v458, %v460
  %v462 = vadd.f32 %v458, %v461
  %vm463 = vweird.f32 %v450
  %vm464 = vweird.f32 %v458
  %vm465 = vmor %vm463, %vm464
  %v466 = vsel %vm465, %v458, %v462
  %v467 = vand.u32 2147483647, %v450
  %vm468 = vcmp.eq.f32.partialorder %v467, 8.507059e+37
  %v469 = vand.u32 %v450, 2147483648
  %v470 = vor.u32 1.1754944e-38, %v469
  %v471 = vsel %vm468, %v470, %v466
  %v472 = vmul.f32 1.0, %v471
  %v473 = vrcp.pop %v451
  %v474 = vmul.f32 %v451, %v473
  %v475 = vsub.f32 1.0, %v474
  %v476 = vmul.f32 %v473, %v475
  %v477 = vadd.f32 %v473, %v476
  %vm478 = vweird.f32 %v451
  %vm479 = vweird.f32 %v473
  %vm480 = vmor %vm478, %vm479
  %v481 = vsel %vm480, %v473, %v477
  %v482 = vand.u32 2147483647, %v451
  %vm483 = vcmp.eq.f32.partialorder %v482, 8.507059e+37
  %v484 = vand.u32 %v451, 2147483648
  %v485 = vor.u32 1.1754944e-38, %v484
  %v486 = vsel %vm483, %v485, %v481
  %v487 = vmul.f32 1.0, %v486
  %v488 = vrcp.pop %v452
  %v489 = vmul.f32 %v452, %v488
  %v490 = vsub.f32 1.0, %v489
  %v491 = vmul.f32 %v488, %v490
  %v492 = vadd.f32 %v488, %v491
  %vm493 = vweird.f32 %v452
  %vm494 = vweird.f32 %v488
  %vm495 = vmor %vm493, %vm494
  %v496 = vsel %vm495, %v488, %v492
  %v497 = vand.u32 2147483647, %v452
  %vm498 = vcmp.eq.f32.partialorder %v497, 8.507059e+37
  %v499 = vand.u32 %v452, 2147483648
  %v500 = vor.u32 1.1754944e-38, %v499
  %v501 = vsel %vm498, %v500, %v496
  %v502 = vmul.f32 1.0, %v501
  %v503 = vrcp.pop %v453
  %v504 = vmul.f32 %v453, %v503
  %v505 = vsub.f32 1.0, %v504
  %v506 = vmul.f32 %v503, %v505
  %v507 = vadd.f32 %v503, %v506
  %vm508 = vweird.f32 %v453
  %vm509 = vweird.f32 %v503
  %vm510 = vmor %vm508, %vm509
  %v511 = vsel %vm510, %v503, %v507
  %v512 = vand.u32 2147483647, %v453
  %vm513 = vcmp.eq.f32.partialorder %v512, 8.507059e+37
  %v514 = vand.u32 %v453, 2147483648
  %v515 = vor.u32 1.1754944e-38, %v514
  %v516 = vsel %vm513, %v515, %v511
  %v517 = vmul.f32 1.0, %v516
  %v518 = vrcp.pop %v454
  %v519 = vmul.f32 %v454, %v518
  %v520 = vsub.f32 1.0, %v519
  %v521 = vmul.f32 %v518, %v520
  %v522 = vadd.f32 %v518, %v521
  %vm523 = vweird.f32 %v454
  %vm524 = vweird.f32 %v518
  %vm525 = vmor %vm523, %vm524
  %v526 = vsel %vm525, %v518, %v522
  %v527 = vand.u32 2147483647, %v454
  %vm528 = vcmp.eq.f32.partialorder %v527, 8.507059e+37
  %v529 = vand.u32 %v454, 2147483648
  %v530 = vor.u32 1.1754944e-38, %v529
  %v531 = vsel %vm528, %v530, %v526
  %v532 = vmul.f32 1.0, %v531
  %v533 = vrcp.pop %v455
  %v534 = vmul.f32 %v455, %v533
  %v535 = vsub.f32 1.0, %v534
  %v536 = vmul.f32 %v533, %v535
  %v537 = vadd.f32 %v533, %v536
  %vm538 = vweird.f32 %v455
  %vm539 = vweird.f32 %v533
  %vm540 = vmor %vm538, %vm539
  %v541 = vsel %vm540, %v533, %v537
  %v542 = vand.u32 2147483647, %v455
  %vm543 = vcmp.eq.f32.partialorder %v542, 8.507059e+37
  %v544 = vand.u32 %v455, 2147483648
  %v545 = vor.u32 1.1754944e-38, %v544
  %v546 = vsel %vm543, %v545, %v541
  %v547 = vmul.f32 1.0, %v546
  %v548 = vrcp.pop %v456
  %v549 = vmul.f32 %v456, %v548
  %v550 = vsub.f32 1.0, %v549
  %v551 = vmul.f32 %v548, %v550
  %v552 = vadd.f32 %v548, %v551
  %vm553 = vweird.f32 %v456
  %vm554 = vweird.f32 %v548
  %vm555 = vmor %vm553, %vm554
  %v556 = vsel %vm555, %v548, %v552
  %v557 = vand.u32 2147483647, %v456
  %vm558 = vcmp.eq.f32.partialorder %v557, 8.507059e+37
  %v559 = vand.u32 %v456, 2147483648
  %v560 = vor.u32 1.1754944e-38, %v559
  %v561 = vsel %vm558, %v560, %v556
  %v562 = vmul.f32 1.0, %v561
  %v563 = vrcp.pop %v457
  %v564 = vmul.f32 %v457, %v563
  %v565 = vsub.f32 1.0, %v564
  %v566 = vmul.f32 %v563, %v565
  %v567 = vadd.f32 %v563, %v566
  %vm568 = vweird.f32 %v457
  %vm569 = vweird.f32 %v563
  %vm570 = vmor %vm568, %vm569
  %v571 = vsel %vm570, %v563, %v567
  %v572 = vand.u32 2147483647, %v457
  %vm573 = vcmp.eq.f32.partialorder %v572, 8.507059e+37
  %v574 = vand.u32 %v457, 2147483648
  %v575 = vor.u32 1.1754944e-38, %v574
  %v576 = vsel %vm573, %v575, %v571
  %v577 = vmul.f32 1.0, %v576
  %578 = vst [vmem:[%s8] sm:$0xff] %v472
  %579 = vst [vmem:[%s8 + $0x8] sm:$0xff] %v487
  %580 = vst [vmem:[%s8 + $0x10] sm:$0xff] %v502
  %581 = vst [vmem:[%s8 + $0x18] sm:$0xff] %v517
  %582 = vst [vmem:[%s8 + $0x20] sm:$0xff] %v532
  %583 = vst [vmem:[%s8 + $0x28] sm:$0xff] %v547
  %584 = vst [vmem:[%s8 + $0x30] sm:$0xff] %v562
  %585 = vst [vmem:[%s8 + $0x38] sm:$0xff] %v577
  // Predicated region
  $region34: #{prgcn_forward.1} parent=0 // pred_check
    _
  $region35: #{prgcn_forward.1} parent=0 // pred_check_branch
    %587 = sbr.rel (0) target = $region37
  $region36: #{prgcn_forward.1} parent=0 // pred_region
    _
  $region37: #{prgcn_forward.1} parent=0 // pred_fallthru
    _
  // Predicated region
  $region38: #{prgcn_forward.1} parent=0 // pred_check
    _
  $region39: #{prgcn_forward.1} parent=0 // pred_check_branch
    %589 = sbr.rel (0) target = $region41
  $region40: #{prgcn_forward.1} parent=0 // pred_region
    _
  $region41: #{prgcn_forward.1} parent=0 // pred_fallthru
    _

</llo_original>
